<compile_context>
chip_gen: v5e
topology: v5e:2x2
jax: 0.10.0
libtpu: 0.0.40
codegen_flags: <defaults>
</compile_context>

<pallas_src>
import functools

import jax
import jax.numpy as jnp
from jax import lax
from jax.experimental import pallas as pl
from jax.experimental.pallas import tpu as pltpu

INPUT_SIZE = 28
HIDDEN = 64
NUM_CLASSES = 10
OUT_PAD = 128      # lane-dense classifier head; columns 10..127 stay zero
MAX_TILE_B = 256   # padded batch rows per grid step


def _lstm_classifier_kernel(
    x_ref,      # (T*TB, I)      bf16  time-major rows of this batch tile
    wih_ref,    # (I, 4H)        bf16  fused input-projection weight (i|f|g|o)
    whh_ref,    # (H, 4H)        bf16  fused recurrent weight (i|f|g|o)
    b_ref,      # (1, 4H)        f32   bias_ih + bias_hh
    wout_ref,   # (H, OUT_PAD)   f32   zero-padded classifier weight
    bout_ref,   # (1, OUT_PAD)   f32
    out_ref,    # (TB, OUT_PAD)  f32
    pre_ref,    # scratch (T*TB, 4H) f32  packed pre-activations
    *, hidden, tile_b, seq_len, unroll):
  """Whole-sequence LSTM + final Linear for one batch tile, all in VMEM."""
  H = hidden
  TB = tile_b
  T = seq_len

  # Hoisted, fused input projection: ONE (T*TB, I) x (I, 4H) bf16 MXU matmul,
  # f32 accumulation, bias folded in.  Scratch is full 256-lane wide.
  pre_ref[...] = (
      jnp.dot(x_ref[...], wih_ref[...], preferred_element_type=jnp.float32)
      + b_ref[...])

  whh = whh_ref[...]                        # (H, 4H) bf16, held in vregs

  h0 = jnp.zeros((TB, H), jnp.float32)
  c0 = jnp.zeros((TB, H), jnp.float32)

  def step(t, carry):
    h, c = carry
    row = pl.multiple_of(t * TB, 8)         # TB is a multiple of 8 sublanes
    # Single fused recurrent matmul: (TB, H) x (H, 4H) -> one wide MXU push.
    gates = (pre_ref[pl.ds(row, TB), :]
             + jnp.dot(h.astype(jnp.bfloat16), whh,
                       preferred_element_type=jnp.float32))
    # Gate order (i, f, g, o).  The 64-lane extractions use the idle XLU.
    i_g = jax.nn.sigmoid(gates[:, 0 * H:1 * H])
    f_g = jax.nn.sigmoid(gates[:, 1 * H:2 * H])
    g_g = jnp.tanh(gates[:, 2 * H:3 * H])
    o_g = jax.nn.sigmoid(gates[:, 3 * H:4 * H])
    c_new = f_g * c + i_g * g_g
    h_new = o_g * jnp.tanh(c_new)
    return h_new, c_new

  h_T, _ = lax.fori_loop(0, T, step, (h0, c0), unroll=unroll)

  # Lane-dense classifier head (unmasked stores); padded columns stay zero.
  out_ref[...] = (jnp.dot(h_T, wout_ref[...],
                          preferred_element_type=jnp.float32)
                  + bout_ref[...])


def _round_up(a, m):
  return ((a + m - 1) // m) * m


def rnn_classifier_forward(x, params, *, max_tile_b=MAX_TILE_B):
  """x: (B, T, INPUT_SIZE) float32  ->  logits (B, 10) float32."""
  B, T, I = x.shape
  H = HIDDEN

  # Batch tiling: single full-resident block for small B, otherwise a 1-D
  # "parallel" grid over batch tiles (shards across v7x's two TensorCores).
  if B <= max_tile_b:
    tile_b = max(8, _round_up(B, 8))
    b_pad = tile_b
  else:
    tile_b = max(8, _round_up(max_tile_b, 8))
    b_pad = _round_up(B, tile_b)
  num_tiles = b_pad // tile_b

  if b_pad != B:
    x = jnp.pad(x, ((0, b_pad - B), (0, 0), (0, 0)))

  # (B,T,I) -> (tiles, T*tile_b, I): time-major within each batch tile so the
  # fused input projection is one well-shaped matmul and time step t occupies
  # sublane-aligned rows [t*tile_b, (t+1)*tile_b).  bf16 matmul operands.
  x_tiles = (x.reshape(num_tiles, tile_b, T, I)
             .transpose(0, 2, 1, 3)
             .reshape(num_tiles, T * tile_b, I)
             .astype(jnp.bfloat16))

  # Fused (lane-packed) weights; gate order i,f,g,o as in PyTorch.
  wih = params["weight_ih"].T.astype(jnp.bfloat16)          # (I, 4H)
  whh = params["weight_hh"].T.astype(jnp.bfloat16)          # (H, 4H)
  b = (params["bias_ih"] + params["bias_hh"])[None, :].astype(jnp.float32)

  wout = jnp.zeros((H, OUT_PAD), jnp.float32).at[:, :NUM_CLASSES].set(
      params["out_weight"].T)
  bout = jnp.zeros((1, OUT_PAD), jnp.float32).at[:, :NUM_CLASSES].set(
      params["out_bias"])

  unroll = True if T <= 32 else 8   # cap unroll for long sequences

  kernel = functools.partial(_lstm_classifier_kernel, hidden=H,
                             tile_b=tile_b, seq_len=T, unroll=unroll)

  out_padded = pl.pallas_call(
      kernel,
      out_shape=jax.ShapeDtypeStruct((b_pad, OUT_PAD), jnp.float32),
      grid=(num_tiles,),
      in_specs=[
          pl.BlockSpec((None, T * tile_b, I), lambda j: (j, 0, 0)),  # x tile
          pl.BlockSpec((I, 4 * H), lambda j: (0, 0)),                # W_ih
          pl.BlockSpec((H, 4 * H), lambda j: (0, 0)),                # W_hh
          pl.BlockSpec((1, 4 * H), lambda j: (0, 0)),                # bias
          pl.BlockSpec((H, OUT_PAD), lambda j: (0, 0)),              # W_out
          pl.BlockSpec((1, OUT_PAD), lambda j: (0, 0)),              # b_out
      ],
      out_specs=pl.BlockSpec((tile_b, OUT_PAD), lambda j: (j, 0)),
      scratch_shapes=[pltpu.VMEM((T * tile_b, 4 * H), jnp.float32)],
      compiler_params=pltpu.CompilerParams(
          dimension_semantics=("parallel",)),
  )(x_tiles, wih, whh, b, wout, bout)

  return out_padded[:B, :NUM_CLASSES]


def init_params(key):
  """Deterministic init matching PyTorch LSTM/Linear parameter shapes."""
  ks = jax.random.split(key, 6)
  bound = 1.0 / jnp.sqrt(jnp.float32(HIDDEN))
  u = lambda k, shape: jax.random.uniform(k, shape, jnp.float32, -bound, bound)
  return {
      "weight_ih": u(ks[0], (4 * HIDDEN, INPUT_SIZE)),   # weight_ih_l0
      "weight_hh": u(ks[1], (4 * HIDDEN, HIDDEN)),       # weight_hh_l0
      "bias_ih":   u(ks[2], (4 * HIDDEN,)),              # bias_ih_l0
      "bias_hh":   u(ks[3], (4 * HIDDEN,)),              # bias_hh_l0
      "out_weight": u(ks[4], (NUM_CLASSES, HIDDEN)),     # out.weight
      "out_bias":   u(ks[5], (NUM_CLASSES,)),            # out.bias
  }


def _reference_forward(x, params):
  """Pure-JAX f32 reference of the PyTorch forward, for sanity checking."""
  B, T, _ = x.shape
  H = HIDDEN
  wih_t = params["weight_ih"].T
  whh_t = params["weight_hh"].T
  b = params["bias_ih"] + params["bias_hh"]
  h = jnp.zeros((B, H), jnp.float32)
  c = jnp.zeros((B, H), jnp.float32)
  for t in range(T):
    gates = x[:, t, :] @ wih_t + h @ whh_t + b
    i_g = jax.nn.sigmoid(gates[:, 0 * H:1 * H])
    f_g = jax.nn.sigmoid(gates[:, 1 * H:2 * H])
    g_g = jnp.tanh(gates[:, 2 * H:3 * H])
    o_g = jax.nn.sigmoid(gates[:, 3 * H:4 * H])
    c = f_g * c + i_g * g_g
    h = o_g * jnp.tanh(c)
  return h @ params["out_weight"].T + params["out_bias"]


if __name__ == "__main__":
  key = jax.random.PRNGKey(0)
  k_param, k_x1, k_x2 = jax.random.split(key, 3)
  params = init_params(k_param)

  # Small single-tile case (grid=(1,)).
  B, T = 2, 8
  x = jax.random.normal(k_x1, (B, T, INPUT_SIZE), jnp.float32)
  logits = jax.block_until_ready(rnn_classifier_forward(x, params))
  ref = _reference_forward(x, params)
  assert logits.shape == (B, NUM_CLASSES)
  # bf16 matmul operands (f32 accumulation) -> relaxed tolerance vs f32 ref.
  assert jnp.allclose(logits, ref, atol=2e-2, rtol=2e-2)

  # Multi-tile case exercising the 1-D parallel batch grid (3 tiles of 8).
  B2 = 24
  x2 = jax.random.normal(k_x2, (B2, T, INPUT_SIZE), jnp.float32)
  logits2 = jax.block_until_ready(
      rnn_classifier_forward(x2, params, max_tile_b=8))
  ref2 = _reference_forward(x2, params)
  assert logits2.shape == (B2, NUM_CLASSES)
  assert jnp.allclose(logits2, ref2, atol=2e-2, rtol=2e-2)

  print("KERNEL_OK")
</pallas_src>

<mosaic_0001>
module attributes {stable_mosaic.version = 11 : i64} {
  func.func @_lstm_classifier_kernel(%arg0: i32, %arg1: memref<1x64x28xbf16, #tpu.memory_space<vmem>>, %arg2: memref<28x256xbf16, #tpu.memory_space<vmem>>, %arg3: memref<64x256xbf16, #tpu.memory_space<vmem>>, %arg4: memref<1x256xf32, #tpu.memory_space<vmem>>, %arg5: memref<64x128xf32, #tpu.memory_space<vmem>>, %arg6: memref<1x128xf32, #tpu.memory_space<vmem>>, %arg7: memref<8x128xf32, #tpu.memory_space<vmem>>, %arg8: memref<64x256xf32, #tpu.memory_space<vmem>>) attributes {dimension_semantics = [#tpu.dimension_semantics<parallel>], iteration_bounds = array<i64: 1>, scalar_prefetch = 0 : i64, scratch_operands = 1 : i64, tpu.core_type = #tpu.core_type<tc>, window_params = [{transform_indices = @transform_0, window_bounds = array<i64: 1, 64, 28>}, {pipeline_mode = #tpu.pipeline_mode<synchronous>, transform_indices = @transform_1, window_bounds = array<i64: 28, 256>}, {pipeline_mode = #tpu.pipeline_mode<synchronous>, transform_indices = @transform_2, window_bounds = array<i64: 64, 256>}, {pipeline_mode = #tpu.pipeline_mode<synchronous>, transform_indices = @transform_3, window_bounds = array<i64: 1, 256>}, {pipeline_mode = #tpu.pipeline_mode<synchronous>, transform_indices = @transform_4, window_bounds = array<i64: 64, 128>}, {pipeline_mode = #tpu.pipeline_mode<synchronous>, transform_indices = @transform_5, window_bounds = array<i64: 1, 128>}, {transform_indices = @transform_6, window_bounds = array<i64: 8, 128>}]} {
    %c0 = arith.constant 0 : index
    %c0_0 = arith.constant 0 : index
    %c0_1 = arith.constant 0 : index
    %0 = vector.load %arg1[%c0, %c0_0, %c0_1] : memref<1x64x28xbf16, #tpu.memory_space<vmem>>, vector<1x64x28xbf16>
    %1 = vector.shape_cast %0 : vector<1x64x28xbf16> to vector<64x28xbf16>
    %c0_2 = arith.constant 0 : index
    %c0_3 = arith.constant 0 : index
    %2 = vector.load %arg2[%c0_2, %c0_3] : memref<28x256xbf16, #tpu.memory_space<vmem>>, vector<28x256xbf16>
    %cst = arith.constant dense<0.000000e+00> : vector<64x256xf32>
    %3 = tpu.matmul %1, %2, %cst {dimension_numbers = #tpu.dot_dimension_numbers<[1], [0], [0], [1], [0, 0, 1, 1], [], []>} : vector<64x28xbf16>, vector<28x256xbf16>, vector<64x256xf32> -> vector<64x256xf32>
    %c0_4 = arith.constant 0 : index
    %c0_5 = arith.constant 0 : index
    %4 = vector.load %arg4[%c0_4, %c0_5] : memref<1x256xf32, #tpu.memory_space<vmem>>, vector<1x256xf32>
    %5 = vector.broadcast %4 : vector<1x256xf32> to vector<64x256xf32>
    %6 = arith.addf %3, %5 : vector<64x256xf32>
    %c0_6 = arith.constant 0 : index
    %c0_7 = arith.constant 0 : index
    %7 = vector.load %arg8[%c0_6, %c0_7] : memref<64x256xf32, #tpu.memory_space<vmem>>, vector<64x256xf32>
    tpu.vector_store %arg8[%c0_6, %c0_7], %6 {strides = array<i32>} : memref<64x256xf32, #tpu.memory_space<vmem>>, vector<64x256xf32>,
    %c0_8 = arith.constant 0 : index
    %c0_9 = arith.constant 0 : index
    %8 = vector.load %arg3[%c0_8, %c0_9] : memref<64x256xbf16, #tpu.memory_space<vmem>>, vector<64x256xbf16>
    %cst_10 = arith.constant 0.000000e+00 : f32
    %9 = vector.broadcast %cst_10 : f32 to vector<8x64xf32>
    %cst_11 = arith.constant 0.000000e+00 : f32
    %10 = vector.broadcast %cst_11 : f32 to vector<8x64xf32>
    %c0_i32 = arith.constant 0 : i32
    %c8_i32 = arith.constant 8 : i32
    %11 = arith.muli %c0_i32, %c8_i32 : i32
    %12 = tpu.assume_multiple %11, 8 : i32
    %13 = arith.index_cast %12 : i32 to index
    %c0_12 = arith.constant 0 : index
    %14 = vector.load %arg8[%13, %c0_12] : memref<64x256xf32, #tpu.memory_space<vmem>>, vector<8x256xf32>
    %15 = arith.truncf %9 : vector<8x64xf32> to vector<8x64xbf16>
    %cst_13 = arith.constant dense<0.000000e+00> : vector<8x256xf32>
    %16 = tpu.matmul %15, %8, %cst_13 {dimension_numbers = #tpu.dot_dimension_numbers<[1], [0], [0], [1], [0, 0, 1, 1], [], []>} : vector<8x64xbf16>, vector<64x256xbf16>, vector<8x256xf32> -> vector<8x256xf32>
    %17 = arith.addf %14, %16 : vector<8x256xf32>
    %18 = vector.extract_strided_slice %17 {offsets = [0, 0], sizes = [8, 64], strides = [1, 1]} : vector<8x256xf32> to vector<8x64xf32>
    %19 = arith.negf %18 : vector<8x64xf32>
    %20 = math.exp %19 : vector<8x64xf32>
    %cst_14 = arith.constant 1.000000e+00 : f32
    %21 = vector.broadcast %cst_14 : f32 to vector<8x64xf32>
    %22 = arith.addf %21, %20 : vector<8x64xf32>
    %23 = arith.divf %21, %22 : vector<8x64xf32>
    %24 = vector.extract_strided_slice %17 {offsets = [0, 64], sizes = [8, 64], strides = [1, 1]} : vector<8x256xf32> to vector<8x64xf32>
    %25 = arith.negf %24 : vector<8x64xf32>
    %26 = math.exp %25 : vector<8x64xf32>
    %cst_15 = arith.constant 1.000000e+00 : f32
    %27 = vector.broadcast %cst_15 : f32 to vector<8x64xf32>
    %28 = arith.addf %27, %26 : vector<8x64xf32>
    %29 = arith.divf %27, %28 : vector<8x64xf32>
    %30 = vector.extract_strided_slice %17 {offsets = [0, 128], sizes = [8, 64], strides = [1, 1]} : vector<8x256xf32> to vector<8x64xf32>
    %31 = math.tanh %30 : vector<8x64xf32>
    %32 = vector.extract_strided_slice %17 {offsets = [0, 192], sizes = [8, 64], strides = [1, 1]} : vector<8x256xf32> to vector<8x64xf32>
    %33 = arith.negf %32 : vector<8x64xf32>
    %34 = math.exp %33 : vector<8x64xf32>
    %cst_16 = arith.constant 1.000000e+00 : f32
    %35 = vector.broadcast %cst_16 : f32 to vector<8x64xf32>
    %36 = arith.addf %35, %34 : vector<8x64xf32>
    %37 = arith.divf %35, %36 : vector<8x64xf32>
    %38 = arith.mulf %29, %10 : vector<8x64xf32>
    %39 = arith.mulf %23, %31 : vector<8x64xf32>
    %40 = arith.addf %38, %39 : vector<8x64xf32>
    %41 = math.tanh %40 : vector<8x64xf32>
    %42 = arith.mulf %37, %41 : vector<8x64xf32>
    %c1_i32 = arith.constant 1 : i32
    %c8_i32_17 = arith.constant 8 : i32
    %43 = arith.muli %c1_i32, %c8_i32_17 : i32
    %44 = tpu.assume_multiple %43, 8 : i32
    %45 = arith.index_cast %44 : i32 to index
    %c0_18 = arith.constant 0 : index
    %46 = vector.load %arg8[%45, %c0_18] : memref<64x256xf32, #tpu.memory_space<vmem>>, vector<8x256xf32>
    %47 = arith.truncf %42 : vector<8x64xf32> to vector<8x64xbf16>
    %cst_19 = arith.constant dense<0.000000e+00> : vector<8x256xf32>
    %48 = tpu.matmul %47, %8, %cst_19 {dimension_numbers = #tpu.dot_dimension_numbers<[1], [0], [0], [1], [0, 0, 1, 1], [], []>} : vector<8x64xbf16>, vector<64x256xbf16>, vector<8x256xf32> -> vector<8x256xf32>
    %49 = arith.addf %46, %48 : vector<8x256xf32>
    %50 = vector.extract_strided_slice %49 {offsets = [0, 0], sizes = [8, 64], strides = [1, 1]} : vector<8x256xf32> to vector<8x64xf32>
    %51 = arith.negf %50 : vector<8x64xf32>
    %52 = math.exp %51 : vector<8x64xf32>
    %cst_20 = arith.constant 1.000000e+00 : f32
    %53 = vector.broadcast %cst_20 : f32 to vector<8x64xf32>
    %54 = arith.addf %53, %52 : vector<8x64xf32>
    %55 = arith.divf %53, %54 : vector<8x64xf32>
    %56 = vector.extract_strided_slice %49 {offsets = [0, 64], sizes = [8, 64], strides = [1, 1]} : vector<8x256xf32> to vector<8x64xf32>
    %57 = arith.negf %56 : vector<8x64xf32>
    %58 = math.exp %57 : vector<8x64xf32>
    %cst_21 = arith.constant 1.000000e+00 : f32
    %59 = vector.broadcast %cst_21 : f32 to vector<8x64xf32>
    %60 = arith.addf %59, %58 : vector<8x64xf32>
    %61 = arith.divf %59, %60 : vector<8x64xf32>
    %62 = vector.extract_strided_slice %49 {offsets = [0, 128], sizes = [8, 64], strides = [1, 1]} : vector<8x256xf32> to vector<8x64xf32>
    %63 = math.tanh %62 : vector<8x64xf32>
    %64 = vector.extract_strided_slice %49 {offsets = [0, 192], sizes = [8, 64], strides = [1, 1]} : vector<8x256xf32> to vector<8x64xf32>
    %65 = arith.negf %64 : vector<8x64xf32>
    %66 = math.exp %65 : vector<8x64xf32>
    %cst_22 = arith.constant 1.000000e+00 : f32
    %67 = vector.broadcast %cst_22 : f32 to vector<8x64xf32>
    %68 = arith.addf %67, %66 : vector<8x64xf32>
    %69 = arith.divf %67, %68 : vector<8x64xf32>
    %70 = arith.mulf %61, %40 : vector<8x64xf32>
    %71 = arith.mulf %55, %63 : vector<8x64xf32>
    %72 = arith.addf %70, %71 : vector<8x64xf32>
    %73 = math.tanh %72 : vector<8x64xf32>
    %74 = arith.mulf %69, %73 : vector<8x64xf32>
    %c2_i32 = arith.constant 2 : i32
    %c8_i32_23 = arith.constant 8 : i32
    %75 = arith.muli %c2_i32, %c8_i32_23 : i32
    %76 = tpu.assume_multiple %75, 8 : i32
    %77 = arith.index_cast %76 : i32 to index
    %c0_24 = arith.constant 0 : index
    %78 = vector.load %arg8[%77, %c0_24] : memref<64x256xf32, #tpu.memory_space<vmem>>, vector<8x256xf32>
    %79 = arith.truncf %74 : vector<8x64xf32> to vector<8x64xbf16>
    %cst_25 = arith.constant dense<0.000000e+00> : vector<8x256xf32>
    %80 = tpu.matmul %79, %8, %cst_25 {dimension_numbers = #tpu.dot_dimension_numbers<[1], [0], [0], [1], [0, 0, 1, 1], [], []>} : vector<8x64xbf16>, vector<64x256xbf16>, vector<8x256xf32> -> vector<8x256xf32>
    %81 = arith.addf %78, %80 : vector<8x256xf32>
    %82 = vector.extract_strided_slice %81 {offsets = [0, 0], sizes = [8, 64], strides = [1, 1]} : vector<8x256xf32> to vector<8x64xf32>
    %83 = arith.negf %82 : vector<8x64xf32>
    %84 = math.exp %83 : vector<8x64xf32>
    %cst_26 = arith.constant 1.000000e+00 : f32
    %85 = vector.broadcast %cst_26 : f32 to vector<8x64xf32>
    %86 = arith.addf %85, %84 : vector<8x64xf32>
    %87 = arith.divf %85, %86 : vector<8x64xf32>
    %88 = vector.extract_strided_slice %81 {offsets = [0, 64], sizes = [8, 64], strides = [1, 1]} : vector<8x256xf32> to vector<8x64xf32>
    %89 = arith.negf %88 : vector<8x64xf32>
    %90 = math.exp %89 : vector<8x64xf32>
    %cst_27 = arith.constant 1.000000e+00 : f32
    %91 = vector.broadcast %cst_27 : f32 to vector<8x64xf32>
    %92 = arith.addf %91, %90 : vector<8x64xf32>
    %93 = arith.divf %91, %92 : vector<8x64xf32>
    %94 = vector.extract_strided_slice %81 {offsets = [0, 128], sizes = [8, 64], strides = [1, 1]} : vector<8x256xf32> to vector<8x64xf32>
    %95 = math.tanh %94 : vector<8x64xf32>
    %96 = vector.extract_strided_slice %81 {offsets = [0, 192], sizes = [8, 64], strides = [1, 1]} : vector<8x256xf32> to vector<8x64xf32>
    %97 = arith.negf %96 : vector<8x64xf32>
    %98 = math.exp %97 : vector<8x64xf32>
    %cst_28 = arith.constant 1.000000e+00 : f32
    %99 = vector.broadcast %cst_28 : f32 to vector<8x64xf32>
    %100 = arith.addf %99, %98 : vector<8x64xf32>
    %101 = arith.divf %99, %100 : vector<8x64xf32>
    %102 = arith.mulf %93, %72 : vector<8x64xf32>
    %103 = arith.mulf %87, %95 : vector<8x64xf32>
    %104 = arith.addf %102, %103 : vector<8x64xf32>
    %105 = math.tanh %104 : vector<8x64xf32>
    %106 = arith.mulf %101, %105 : vector<8x64xf32>
    %c3_i32 = arith.constant 3 : i32
    %c8_i32_29 = arith.constant 8 : i32
    %107 = arith.muli %c3_i32, %c8_i32_29 : i32
    %108 = tpu.assume_multiple %107, 8 : i32
    %109 = arith.index_cast %108 : i32 to index
    %c0_30 = arith.constant 0 : index
    %110 = vector.load %arg8[%109, %c0_30] : memref<64x256xf32, #tpu.memory_space<vmem>>, vector<8x256xf32>
    %111 = arith.truncf %106 : vector<8x64xf32> to vector<8x64xbf16>
    %cst_31 = arith.constant dense<0.000000e+00> : vector<8x256xf32>
    %112 = tpu.matmul %111, %8, %cst_31 {dimension_numbers = #tpu.dot_dimension_numbers<[1], [0], [0], [1], [0, 0, 1, 1], [], []>} : vector<8x64xbf16>, vector<64x256xbf16>, vector<8x256xf32> -> vector<8x256xf32>
    %113 = arith.addf %110, %112 : vector<8x256xf32>
    %114 = vector.extract_strided_slice %113 {offsets = [0, 0], sizes = [8, 64], strides = [1, 1]} : vector<8x256xf32> to vector<8x64xf32>
    %115 = arith.negf %114 : vector<8x64xf32>
    %116 = math.exp %115 : vector<8x64xf32>
    %cst_32 = arith.constant 1.000000e+00 : f32
    %117 = vector.broadcast %cst_32 : f32 to vector<8x64xf32>
    %118 = arith.addf %117, %116 : vector<8x64xf32>
    %119 = arith.divf %117, %118 : vector<8x64xf32>
    %120 = vector.extract_strided_slice %113 {offsets = [0, 64], sizes = [8, 64], strides = [1, 1]} : vector<8x256xf32> to vector<8x64xf32>
    %121 = arith.negf %120 : vector<8x64xf32>
    %122 = math.exp %121 : vector<8x64xf32>
    %cst_33 = arith.constant 1.000000e+00 : f32
    %123 = vector.broadcast %cst_33 : f32 to vector<8x64xf32>
    %124 = arith.addf %123, %122 : vector<8x64xf32>
    %125 = arith.divf %123, %124 : vector<8x64xf32>
    %126 = vector.extract_strided_slice %113 {offsets = [0, 128], sizes = [8, 64], strides = [1, 1]} : vector<8x256xf32> to vector<8x64xf32>
    %127 = math.tanh %126 : vector<8x64xf32>
    %128 = vector.extract_strided_slice %113 {offsets = [0, 192], sizes = [8, 64], strides = [1, 1]} : vector<8x256xf32> to vector<8x64xf32>
    %129 = arith.negf %128 : vector<8x64xf32>
    %130 = math.exp %129 : vector<8x64xf32>
    %cst_34 = arith.constant 1.000000e+00 : f32
    %131 = vector.broadcast %cst_34 : f32 to vector<8x64xf32>
    %132 = arith.addf %131, %130 : vector<8x64xf32>
    %133 = arith.divf %131, %132 : vector<8x64xf32>
    %134 = arith.mulf %125, %104 : vector<8x64xf32>
    %135 = arith.mulf %119, %127 : vector<8x64xf32>
    %136 = arith.addf %134, %135 : vector<8x64xf32>
    %137 = math.tanh %136 : vector<8x64xf32>
    %138 = arith.mulf %133, %137 : vector<8x64xf32>
    %c4_i32 = arith.constant 4 : i32
    %c8_i32_35 = arith.constant 8 : i32
    %139 = arith.muli %c4_i32, %c8_i32_35 : i32
    %140 = tpu.assume_multiple %139, 8 : i32
    %141 = arith.index_cast %140 : i32 to index
    %c0_36 = arith.constant 0 : index
    %142 = vector.load %arg8[%141, %c0_36] : memref<64x256xf32, #tpu.memory_space<vmem>>, vector<8x256xf32>
    %143 = arith.truncf %138 : vector<8x64xf32> to vector<8x64xbf16>
    %cst_37 = arith.constant dense<0.000000e+00> : vector<8x256xf32>
    %144 = tpu.matmul %143, %8, %cst_37 {dimension_numbers = #tpu.dot_dimension_numbers<[1], [0], [0], [1], [0, 0, 1, 1], [], []>} : vector<8x64xbf16>, vector<64x256xbf16>, vector<8x256xf32> -> vector<8x256xf32>
    %145 = arith.addf %142, %144 : vector<8x256xf32>
    %146 = vector.extract_strided_slice %145 {offsets = [0, 0], sizes = [8, 64], strides = [1, 1]} : vector<8x256xf32> to vector<8x64xf32>
    %147 = arith.negf %146 : vector<8x64xf32>
    %148 = math.exp %147 : vector<8x64xf32>
    %cst_38 = arith.constant 1.000000e+00 : f32
    %149 = vector.broadcast %cst_38 : f32 to vector<8x64xf32>
    %150 = arith.addf %149, %148 : vector<8x64xf32>
    %151 = arith.divf %149, %150 : vector<8x64xf32>
    %152 = vector.extract_strided_slice %145 {offsets = [0, 64], sizes = [8, 64], strides = [1, 1]} : vector<8x256xf32> to vector<8x64xf32>
    %153 = arith.negf %152 : vector<8x64xf32>
    %154 = math.exp %153 : vector<8x64xf32>
    %cst_39 = arith.constant 1.000000e+00 : f32
    %155 = vector.broadcast %cst_39 : f32 to vector<8x64xf32>
    %156 = arith.addf %155, %154 : vector<8x64xf32>
    %157 = arith.divf %155, %156 : vector<8x64xf32>
    %158 = vector.extract_strided_slice %145 {offsets = [0, 128], sizes = [8, 64], strides = [1, 1]} : vector<8x256xf32> to vector<8x64xf32>
    %159 = math.tanh %158 : vector<8x64xf32>
    %160 = vector.extract_strided_slice %145 {offsets = [0, 192], sizes = [8, 64], strides = [1, 1]} : vector<8x256xf32> to vector<8x64xf32>
    %161 = arith.negf %160 : vector<8x64xf32>
    %162 = math.exp %161 : vector<8x64xf32>
    %cst_40 = arith.constant 1.000000e+00 : f32
    %163 = vector.broadcast %cst_40 : f32 to vector<8x64xf32>
    %164 = arith.addf %163, %162 : vector<8x64xf32>
    %165 = arith.divf %163, %164 : vector<8x64xf32>
    %166 = arith.mulf %157, %136 : vector<8x64xf32>
    %167 = arith.mulf %151, %159 : vector<8x64xf32>
    %168 = arith.addf %166, %167 : vector<8x64xf32>
    %169 = math.tanh %168 : vector<8x64xf32>
    %170 = arith.mulf %165, %169 : vector<8x64xf32>
    %c5_i32 = arith.constant 5 : i32
    %c8_i32_41 = arith.constant 8 : i32
    %171 = arith.muli %c5_i32, %c8_i32_41 : i32
    %172 = tpu.assume_multiple %171, 8 : i32
    %173 = arith.index_cast %172 : i32 to index
    %c0_42 = arith.constant 0 : index
    %174 = vector.load %arg8[%173, %c0_42] : memref<64x256xf32, #tpu.memory_space<vmem>>, vector<8x256xf32>
    %175 = arith.truncf %170 : vector<8x64xf32> to vector<8x64xbf16>
    %cst_43 = arith.constant dense<0.000000e+00> : vector<8x256xf32>
    %176 = tpu.matmul %175, %8, %cst_43 {dimension_numbers = #tpu.dot_dimension_numbers<[1], [0], [0], [1], [0, 0, 1, 1], [], []>} : vector<8x64xbf16>, vector<64x256xbf16>, vector<8x256xf32> -> vector<8x256xf32>
    %177 = arith.addf %174, %176 : vector<8x256xf32>
    %178 = vector.extract_strided_slice %177 {offsets = [0, 0], sizes = [8, 64], strides = [1, 1]} : vector<8x256xf32> to vector<8x64xf32>
    %179 = arith.negf %178 : vector<8x64xf32>
    %180 = math.exp %179 : vector<8x64xf32>
    %cst_44 = arith.constant 1.000000e+00 : f32
    %181 = vector.broadcast %cst_44 : f32 to vector<8x64xf32>
    %182 = arith.addf %181, %180 : vector<8x64xf32>
    %183 = arith.divf %181, %182 : vector<8x64xf32>
    %184 = vector.extract_strided_slice %177 {offsets = [0, 64], sizes = [8, 64], strides = [1, 1]} : vector<8x256xf32> to vector<8x64xf32>
    %185 = arith.negf %184 : vector<8x64xf32>
    %186 = math.exp %185 : vector<8x64xf32>
    %cst_45 = arith.constant 1.000000e+00 : f32
    %187 = vector.broadcast %cst_45 : f32 to vector<8x64xf32>
    %188 = arith.addf %187, %186 : vector<8x64xf32>
    %189 = arith.divf %187, %188 : vector<8x64xf32>
    %190 = vector.extract_strided_slice %177 {offsets = [0, 128], sizes = [8, 64], strides = [1, 1]} : vector<8x256xf32> to vector<8x64xf32>
    %191 = math.tanh %190 : vector<8x64xf32>
    %192 = vector.extract_strided_slice %177 {offsets = [0, 192], sizes = [8, 64], strides = [1, 1]} : vector<8x256xf32> to vector<8x64xf32>
    %193 = arith.negf %192 : vector<8x64xf32>
    %194 = math.exp %193 : vector<8x64xf32>
    %cst_46 = arith.constant 1.000000e+00 : f32
    %195 = vector.broadcast %cst_46 : f32 to vector<8x64xf32>
    %196 = arith.addf %195, %194 : vector<8x64xf32>
    %197 = arith.divf %195, %196 : vector<8x64xf32>
    %198 = arith.mulf %189, %168 : vector<8x64xf32>
    %199 = arith.mulf %183, %191 : vector<8x64xf32>
    %200 = arith.addf %198, %199 : vector<8x64xf32>
    %201 = math.tanh %200 : vector<8x64xf32>
    %202 = arith.mulf %197, %201 : vector<8x64xf32>
    %c6_i32 = arith.constant 6 : i32
    %c8_i32_47 = arith.constant 8 : i32
    %203 = arith.muli %c6_i32, %c8_i32_47 : i32
    %204 = tpu.assume_multiple %203, 8 : i32
    %205 = arith.index_cast %204 : i32 to index
    %c0_48 = arith.constant 0 : index
    %206 = vector.load %arg8[%205, %c0_48] : memref<64x256xf32, #tpu.memory_space<vmem>>, vector<8x256xf32>
    %207 = arith.truncf %202 : vector<8x64xf32> to vector<8x64xbf16>
    %cst_49 = arith.constant dense<0.000000e+00> : vector<8x256xf32>
    %208 = tpu.matmul %207, %8, %cst_49 {dimension_numbers = #tpu.dot_dimension_numbers<[1], [0], [0], [1], [0, 0, 1, 1], [], []>} : vector<8x64xbf16>, vector<64x256xbf16>, vector<8x256xf32> -> vector<8x256xf32>
    %209 = arith.addf %206, %208 : vector<8x256xf32>
    %210 = vector.extract_strided_slice %209 {offsets = [0, 0], sizes = [8, 64], strides = [1, 1]} : vector<8x256xf32> to vector<8x64xf32>
    %211 = arith.negf %210 : vector<8x64xf32>
    %212 = math.exp %211 : vector<8x64xf32>
    %cst_50 = arith.constant 1.000000e+00 : f32
    %213 = vector.broadcast %cst_50 : f32 to vector<8x64xf32>
    %214 = arith.addf %213, %212 : vector<8x64xf32>
    %215 = arith.divf %213, %214 : vector<8x64xf32>
    %216 = vector.extract_strided_slice %209 {offsets = [0, 64], sizes = [8, 64], strides = [1, 1]} : vector<8x256xf32> to vector<8x64xf32>
    %217 = arith.negf %216 : vector<8x64xf32>
    %218 = math.exp %217 : vector<8x64xf32>
    %cst_51 = arith.constant 1.000000e+00 : f32
    %219 = vector.broadcast %cst_51 : f32 to vector<8x64xf32>
    %220 = arith.addf %219, %218 : vector<8x64xf32>
    %221 = arith.divf %219, %220 : vector<8x64xf32>
    %222 = vector.extract_strided_slice %209 {offsets = [0, 128], sizes = [8, 64], strides = [1, 1]} : vector<8x256xf32> to vector<8x64xf32>
    %223 = math.tanh %222 : vector<8x64xf32>
    %224 = vector.extract_strided_slice %209 {offsets = [0, 192], sizes = [8, 64], strides = [1, 1]} : vector<8x256xf32> to vector<8x64xf32>
    %225 = arith.negf %224 : vector<8x64xf32>
    %226 = math.exp %225 : vector<8x64xf32>
    %cst_52 = arith.constant 1.000000e+00 : f32
    %227 = vector.broadcast %cst_52 : f32 to vector<8x64xf32>
    %228 = arith.addf %227, %226 : vector<8x64xf32>
    %229 = arith.divf %227, %228 : vector<8x64xf32>
    %230 = arith.mulf %221, %200 : vector<8x64xf32>
    %231 = arith.mulf %215, %223 : vector<8x64xf32>
    %232 = arith.addf %230, %231 : vector<8x64xf32>
    %233 = math.tanh %232 : vector<8x64xf32>
    %234 = arith.mulf %229, %233 : vector<8x64xf32>
    %c7_i32 = arith.constant 7 : i32
    %c8_i32_53 = arith.constant 8 : i32
    %235 = arith.muli %c7_i32, %c8_i32_53 : i32
    %236 = tpu.assume_multiple %235, 8 : i32
    %237 = arith.index_cast %236 : i32 to index
    %c0_54 = arith.constant 0 : index
    %238 = vector.load %arg8[%237, %c0_54] : memref<64x256xf32, #tpu.memory_space<vmem>>, vector<8x256xf32>
    %239 = arith.truncf %234 : vector<8x64xf32> to vector<8x64xbf16>
    %cst_55 = arith.constant dense<0.000000e+00> : vector<8x256xf32>
    %240 = tpu.matmul %239, %8, %cst_55 {dimension_numbers = #tpu.dot_dimension_numbers<[1], [0], [0], [1], [0, 0, 1, 1], [], []>} : vector<8x64xbf16>, vector<64x256xbf16>, vector<8x256xf32> -> vector<8x256xf32>
    %241 = arith.addf %238, %240 : vector<8x256xf32>
    %242 = vector.extract_strided_slice %241 {offsets = [0, 0], sizes = [8, 64], strides = [1, 1]} : vector<8x256xf32> to vector<8x64xf32>
    %243 = arith.negf %242 : vector<8x64xf32>
    %244 = math.exp %243 : vector<8x64xf32>
    %cst_56 = arith.constant 1.000000e+00 : f32
    %245 = vector.broadcast %cst_56 : f32 to vector<8x64xf32>
    %246 = arith.addf %245, %244 : vector<8x64xf32>
    %247 = arith.divf %245, %246 : vector<8x64xf32>
    %248 = vector.extract_strided_slice %241 {offsets = [0, 64], sizes = [8, 64], strides = [1, 1]} : vector<8x256xf32> to vector<8x64xf32>
    %249 = arith.negf %248 : vector<8x64xf32>
    %250 = math.exp %249 : vector<8x64xf32>
    %cst_57 = arith.constant 1.000000e+00 : f32
    %251 = vector.broadcast %cst_57 : f32 to vector<8x64xf32>
    %252 = arith.addf %251, %250 : vector<8x64xf32>
    %253 = arith.divf %251, %252 : vector<8x64xf32>
    %254 = vector.extract_strided_slice %241 {offsets = [0, 128], sizes = [8, 64], strides = [1, 1]} : vector<8x256xf32> to vector<8x64xf32>
    %255 = math.tanh %254 : vector<8x64xf32>
    %256 = vector.extract_strided_slice %241 {offsets = [0, 192], sizes = [8, 64], strides = [1, 1]} : vector<8x256xf32> to vector<8x64xf32>
    %257 = arith.negf %256 : vector<8x64xf32>
    %258 = math.exp %257 : vector<8x64xf32>
    %cst_58 = arith.constant 1.000000e+00 : f32
    %259 = vector.broadcast %cst_58 : f32 to vector<8x64xf32>
    %260 = arith.addf %259, %258 : vector<8x64xf32>
    %261 = arith.divf %259, %260 : vector<8x64xf32>
    %262 = arith.mulf %253, %232 : vector<8x64xf32>
    %263 = arith.mulf %247, %255 : vector<8x64xf32>
    %264 = arith.addf %262, %263 : vector<8x64xf32>
    %265 = math.tanh %264 : vector<8x64xf32>
    %266 = arith.mulf %261, %265 : vector<8x64xf32>
    %c8_i32_59 = arith.constant 8 : i32
    %c0_60 = arith.constant 0 : index
    %c0_61 = arith.constant 0 : index
    %267 = vector.load %arg5[%c0_60, %c0_61] : memref<64x128xf32, #tpu.memory_space<vmem>>, vector<64x128xf32>
    %cst_62 = arith.constant dense<0.000000e+00> : vector<8x128xf32>
    %268 = tpu.matmul %266, %267, %cst_62 {dimension_numbers = #tpu.dot_dimension_numbers<[1], [0], [0], [1], [0, 0, 1, 1], [], []>} : vector<8x64xf32>, vector<64x128xf32>, vector<8x128xf32> -> vector<8x128xf32>
    %c0_63 = arith.constant 0 : index
    %c0_64 = arith.constant 0 : index
    %269 = vector.load %arg6[%c0_63, %c0_64] : memref<1x128xf32, #tpu.memory_space<vmem>>, vector<1x128xf32>
    %270 = vector.broadcast %269 : vector<1x128xf32> to vector<8x128xf32>
    %271 = arith.addf %268, %270 : vector<8x128xf32>
    %c0_65 = arith.constant 0 : index
    %c0_66 = arith.constant 0 : index
    %272 = vector.load %arg7[%c0_65, %c0_66] : memref<8x128xf32, #tpu.memory_space<vmem>>, vector<8x128xf32>
    tpu.vector_store %arg7[%c0_65, %c0_66], %271 {strides = array<i32>} : memref<8x128xf32, #tpu.memory_space<vmem>>, vector<8x128xf32>,
    return
  }
  func.func @transform_0(%arg0: i32) -> (i32, i32, i32) {
    %c0_i32 = arith.constant 0 : i32
    %c0_i32_0 = arith.constant 0 : i32
    %c0_i32_1 = arith.constant 0 : i32
    return %arg0, %c0_i32, %c0_i32_0 : i32, i32, i32
  }
  func.func @transform_1(%arg0: i32) -> (i32, i32) {
    %c0_i32 = arith.constant 0 : i32
    %c0_i32_0 = arith.constant 0 : i32
    %c0_i32_1 = arith.constant 0 : i32
    return %c0_i32, %c0_i32_0 : i32, i32
  }
  func.func @transform_2(%arg0: i32) -> (i32, i32) {
    %c0_i32 = arith.constant 0 : i32
    %c0_i32_0 = arith.constant 0 : i32
    %c0_i32_1 = arith.constant 0 : i32
    return %c0_i32, %c0_i32_0 : i32, i32
  }
  func.func @transform_3(%arg0: i32) -> (i32, i32) {
    %c0_i32 = arith.constant 0 : i32
    %c0_i32_0 = arith.constant 0 : i32
    %c0_i32_1 = arith.constant 0 : i32
    return %c0_i32, %c0_i32_0 : i32, i32
  }
  func.func @transform_4(%arg0: i32) -> (i32, i32) {
    %c0_i32 = arith.constant 0 : i32
    %c0_i32_0 = arith.constant 0 : i32
    %c0_i32_1 = arith.constant 0 : i32
    return %c0_i32, %c0_i32_0 : i32, i32
  }
  func.func @transform_5(%arg0: i32) -> (i32, i32) {
    %c0_i32 = arith.constant 0 : i32
    %c0_i32_0 = arith.constant 0 : i32
    %c0_i32_1 = arith.constant 0 : i32
    return %c0_i32, %c0_i32_0 : i32, i32
  }
  func.func @transform_6(%arg0: i32) -> (i32, i32) {
    %c0_i32 = arith.constant 0 : i32
    %c0_i32_0 = arith.constant 0 : i32
    return %arg0, %c0_i32 : i32, i32
  }
}

</mosaic_0001>

<llo_original>
// kernel: tpu_custom_call.1
$region0: #{tpu_custom_call.1}
  #allocation0 [shape = 'u32[]', space=smem, size = 0x4, offset = 0x4, fixed_abs, tag = 'smem constant byte address 0x4 - core index']
  #allocation1 [shape = 'u32[72,128]{1,0:T(1,128)}', space=vmem, size = 0x9000, scoped, tag = 'internal scratch']
  #allocation2 [shape = 'f32[64,256]{1,0:T(8,128)}', space=vmem, size = 0x10000, scoped, tag = 'scratch operand']
  %s0 = inlined_call_operand.vmem [shape: bf16[1,64,28], index: 0, kind: input, shape index: {}]
  %s1 = inlined_call_operand.vmem [shape: bf16[28,256], index: 1, kind: input, shape index: {}]
  %s2 = inlined_call_operand.hbm [shape: bf16[64,256], index: 2, kind: input, shape index: {}]
  %s3 = inlined_call_operand.vmem [shape: f32[1,256], index: 3, kind: input, shape index: {}]
  %s4 = inlined_call_operand.hbm [shape: f32[64,128], index: 4, kind: input, shape index: {}]
  %s5 = inlined_call_operand.vmem [shape: f32[1,128], index: 5, kind: input, shape index: {}]
  %s6 = inlined_call_operand.hbm [shape: f32[8,128], index: 6, kind: output, shape index: {}]
  %s7 = sld [smem:[#allocation0]]
  $region42: #{tpu_custom_call.1} parent=0
    _
  %s9 = ssub.s32 1, %s7
  %s10 = scalar_select 0, %s9, %s7
  $region1: #{tpu_custom_call.1} parent=0
    #allocation3 [shape = 'u8[32768]{0}', space=vmem, size = 0x8000, scoped, tag = 'input window, operand 2, single buffered']
    #allocation4 [shape = 's32[1]{0}', space=sflag, size = 0x4, scoped, tag = 'scoped memory for tpu_custom_call.1']
    #allocation5 [shape = 's32[1]{0}', space=sflag, size = 0x4, scoped, tag = 'scoped memory for tpu_custom_call.1']
    #allocation6 [shape = 'u8[32768]{0}', space=vmem, size = 0x8000, scoped, tag = 'input window, operand 4, single buffered']
    #allocation7 [shape = 's32[1]{0}', space=sflag, size = 0x4, scoped, tag = 'scoped memory for tpu_custom_call.1']
    #allocation8 [shape = 'u8[4096]{0}', space=vmem, size = 0x1000, scoped, tag = 'output window, operand 0, single buffered']
    %11 = vsyncpa [#allocation4], 0
    %12 = vsyncpa [#allocation7], 0
    %13 = vsyncpa [#allocation5], 0
    // Predicated region
    $region2: #{tpu_custom_call.1} parent=1 // pred_check
      _
    $region3: #{tpu_custom_call.1} parent=1 // pred_check_branch
      %15 = sbr.rel (0) target = $region5
    $region4: #{tpu_custom_call.1} parent=1 // pred_region
      _
    $region5: #{tpu_custom_call.1} parent=1 // pred_fallthru
      _
    // Predicated region
    $region6: #{tpu_custom_call.1} parent=1 // pred_check
      _
    $region7: #{tpu_custom_call.1} parent=1 // pred_check_branch
      %17 = sbr.rel (0) target = $region9
    $region8: #{tpu_custom_call.1} parent=1 // pred_region
      _
    $region9: #{tpu_custom_call.1} parent=1 // pred_fallthru
      _
    // Predicated region
    $region10: #{tpu_custom_call.1} parent=1 // pred_check
      _
    $region11: #{tpu_custom_call.1} parent=1 // pred_check_branch
      %19 = sbr.rel (0) target = $region13
    $region12: #{tpu_custom_call.1} parent=1 // pred_region
      %21 = vsyncadd [#allocation4], 0
      %s22 = sshll.u32 %s2, 4
      %s23 = int_to_ptr.hbm [resolvable:$true] %s22
      %s24 = sshll.u32 [#allocation3], 4
      %s25 = int_to_ptr.vmem [resolvable:$true] %s24
      %30 = dma.hbm_to_vmem [thread:$0]  %s23, 1024, %s25, [#allocation4], 128, 128, 8
    $region13: #{tpu_custom_call.1} parent=1 // pred_fallthru
      _
    // Predicated region
    $region14: #{tpu_custom_call.1} parent=1 // pred_check
      _
    $region15: #{tpu_custom_call.1} parent=1 // pred_check_branch
      %32 = sbr.rel (0) target = $region17
    $region16: #{tpu_custom_call.1} parent=1 // pred_region
      _
    $region17: #{tpu_custom_call.1} parent=1 // pred_fallthru
      _
    // Predicated region
    $region18: #{tpu_custom_call.1} parent=1 // pred_check
      _
    $region19: #{tpu_custom_call.1} parent=1 // pred_check_branch
      %34 = sbr.rel (0) target = $region21
    $region20: #{tpu_custom_call.1} parent=1 // pred_region
      %36 = vsyncadd [#allocation7], 0
      %s37 = sshll.u32 %s4, 4
      %s38 = int_to_ptr.hbm [resolvable:$true] %s37
      %s39 = sshll.u32 [#allocation6], 4
      %s40 = int_to_ptr.vmem [resolvable:$true] %s39
      %45 = dma.hbm_to_vmem [thread:$0]  %s38, 1024, %s40, [#allocation7], 128, 128, 8
    $region21: #{tpu_custom_call.1} parent=1 // pred_fallthru
      _
    // Predicated region
    $region22: #{tpu_custom_call.1} parent=1 // pred_check
      _
    $region23: #{tpu_custom_call.1} parent=1 // pred_check_branch
      %47 = sbr.rel (0) target = $region25
    $region24: #{tpu_custom_call.1} parent=1 // pred_region
      _
    $region25: #{tpu_custom_call.1} parent=1 // pred_fallthru
      _
    // Predicated region
    $region26: #{tpu_custom_call.1} parent=1 // pred_check
      _
    $region27: #{tpu_custom_call.1} parent=1 // pred_check_branch
      %49 = sbr.rel (0) target = $region29
    $region28: #{tpu_custom_call.1} parent=1 // pred_region
      %51 = dma.done [#allocation4], 1024
    $region29: #{tpu_custom_call.1} parent=1 // pred_fallthru
      _
    // Predicated region
    $region30: #{tpu_custom_call.1} parent=1 // pred_check
      _
    $region31: #{tpu_custom_call.1} parent=1 // pred_check_branch
      %53 = sbr.rel (0) target = $region33
    $region32: #{tpu_custom_call.1} parent=1 // pred_region
      %55 = dma.done [#allocation7], 1024
    $region33: #{tpu_custom_call.1} parent=1 // pred_fallthru
      _
    %v57 = vld [vmem:[%s0] sm:$0xf]
    %v58 = vld [vmem:[%s0 + $0x4] sm:$0xf]
    %v59 = vld [vmem:[%s0 + $0x8] sm:$0xf]
    %v60 = vld [vmem:[%s0 + $0xc] sm:$0xf]
    %v61 = vld [vmem:[%s0 + $0x10] sm:$0xf]
    %v62 = vld [vmem:[%s0 + $0x14] sm:$0xf]
    %v63 = vld [vmem:[%s0 + $0x18] sm:$0xf]
    %v64 = vld [vmem:[%s0 + $0x1c] sm:$0xf]
    %v65 = vld [vmem:[%s1] sm:$0xff]
    %v66 = vld [vmem:[%s1 + $0x8] sm:$0xff]
    %v67 = vld [vmem:[%s1 + $0x10] sm:$0xff]
    %v68 = vld [vmem:[%s1 + $0x18] sm:$0x33]
    %v69 = vld [vmem:[%s3] sm:$0x3]
    %v71 = vperm.slane %v69, 0
    %v72 = vperm.slane %v69, 1
    %v83 = vunpack.c.l.b16 %v57
    %v84 = vunpack.c.l.b16 %v58
    %v85 = vunpack.c.l.b16 %v59
    %v86 = vunpack.c.l.b16 %v60
    %v87 = vunpack.c.l.b16 %v61
    %v88 = vunpack.c.l.b16 %v62
    %v89 = vunpack.c.l.b16 %v63
    %v90 = vunpack.c.l.b16 %v64
    %v91 = vpack.c.b16 %v84, %v83
    %v92 = vpack.c.b16 %v86, %v85
    %v93 = vpack.c.b16 %v88, %v87
    %v94 = vpack.c.b16 %v90, %v89
    %v99 = vunpack.c.l.b16 %v65
    %v100 = vunpack.c.h.b16 %v65
    %v101 = vunpack.c.l.b16 %v66
    %v102 = vunpack.c.h.b16 %v66
    %v103 = vunpack.c.l.b16 %v67
    %v104 = vunpack.c.h.b16 %v67
    %v105 = vunpack.c.l.b16 %v68
    %v106 = vunpack.c.h.b16 %v68
    %v107 = vpack.c.b16 %v101, %v99
    %v108 = vpack.c.b16 %v102, %v100
    %v109 = vpack.c.b16 %v105, %v103
    %v110 = vpack.c.b16 %v106, %v104
    %vm113 = vcmask 228352
    %v115 = vsel %vm113, %v91, 0
    %v118 = vsel %vm113, %v92, 0
    %v121 = vsel %vm113, %v93, 0
    %v124 = vsel %vm113, %v94, 0
    %vm126 = vcmask 1045504
    %v128 = vsel %vm126, %v109, 0
    %v131 = vsel %vm126, %v110, 0
    %133 = vmatpush.bf16.msra.mxu0 0
    %134 = vmatpush.bf16.msra.mxu0 0
    %135 = vmatpush.bf16.msra.mxu0 0
    %136 = vmatpush.bf16.msra.mxu0 0
    %137 = vmatpush.bf16.msra.mxu0 0
    %138 = vmatpush.bf16.msra.mxu0 0
    %139 = vmatpush.bf16.msra.mxu0 %v128
    %140 = vmatpush.bf16.msra.mxu0 %v107
    %141 = vmatmul.bf16.gmra.mxu0 %v115
    %v142 = vpop.f32.mrf.mxu0
    %v143 = vadd.f32 %v71, %v142
    %v144 = vpop.f32.mrf.mxu0
    %v145 = vadd.f32 %v71, %v144
    %146 = vmatmul.bf16.gmra.mxu0 %v118
    %v147 = vpop.f32.mrf.mxu0
    %v148 = vadd.f32 %v71, %v147
    %v149 = vpop.f32.mrf.mxu0
    %v150 = vadd.f32 %v71, %v149
    %151 = vmatmul.bf16.gmra.mxu0 %v121
    %v152 = vpop.f32.mrf.mxu0
    %v153 = vadd.f32 %v71, %v152
    %v154 = vpop.f32.mrf.mxu0
    %v155 = vadd.f32 %v71, %v154
    %156 = vmatmul.bf16.gmra.mxu0 %v124
    %v157 = vpop.f32.mrf.mxu0
    %v158 = vadd.f32 %v71, %v157
    %v159 = vpop.f32.mrf.mxu0
    %v160 = vadd.f32 %v71, %v159
    %161 = vdwg.mxu0
    %162 = vmatpush.bf16.msra.mxu0 0
    %163 = vmatpush.bf16.msra.mxu0 0
    %164 = vmatpush.bf16.msra.mxu0 0
    %165 = vmatpush.bf16.msra.mxu0 0
    %166 = vmatpush.bf16.msra.mxu0 0
    %167 = vmatpush.bf16.msra.mxu0 0
    %168 = vmatpush.bf16.msra.mxu0 %v131
    %169 = vmatpush.bf16.msra.mxu0 %v108
    %170 = vmatmul.bf16.gmra.mxu0 %v115
    %v171 = vpop.f32.mrf.mxu0
    %v172 = vadd.f32 %v72, %v171
    %v173 = vpop.f32.mrf.mxu0
    %v174 = vadd.f32 %v72, %v173
    %175 = vmatmul.bf16.gmra.mxu0 %v118
    %v176 = vpop.f32.mrf.mxu0
    %v177 = vadd.f32 %v72, %v176
    %v178 = vpop.f32.mrf.mxu0
    %v179 = vadd.f32 %v72, %v178
    %180 = vmatmul.bf16.gmra.mxu0 %v121
    %v181 = vpop.f32.mrf.mxu0
    %v182 = vadd.f32 %v72, %v181
    %v183 = vpop.f32.mrf.mxu0
    %v184 = vadd.f32 %v72, %v183
    %185 = vmatmul.bf16.gmra.mxu0 %v124
    %v186 = vpop.f32.mrf.mxu0
    %v187 = vadd.f32 %v72, %v186
    %v188 = vpop.f32.mrf.mxu0
    %v189 = vadd.f32 %v72, %v188
    %190 = vdwg.mxu0
    %191 = vst [vmem:[#allocation2] sm:$0xff] %v143
    %192 = vst [vmem:[#allocation2 + $0x8] sm:$0xff] %v172
    %193 = vst [vmem:[#allocation2 + $0x10] sm:$0xff] %v145
    %194 = vst [vmem:[#allocation2 + $0x18] sm:$0xff] %v174
    %195 = vst [vmem:[#allocation2 + $0x20] sm:$0xff] %v148
    %196 = vst [vmem:[#allocation2 + $0x28] sm:$0xff] %v177
    %197 = vst [vmem:[#allocation2 + $0x30] sm:$0xff] %v150
    %198 = vst [vmem:[#allocation2 + $0x38] sm:$0xff] %v179
    %199 = vst [vmem:[#allocation2 + $0x40] sm:$0xff] %v153
    %200 = vst [vmem:[#allocation2 + $0x48] sm:$0xff] %v182
    %201 = vst [vmem:[#allocation2 + $0x50] sm:$0xff] %v155
    %202 = vst [vmem:[#allocation2 + $0x58] sm:$0xff] %v184
    %203 = vst [vmem:[#allocation2 + $0x60] sm:$0xff] %v158
    %204 = vst [vmem:[#allocation2 + $0x68] sm:$0xff] %v187
    %205 = vst [vmem:[#allocation2 + $0x70] sm:$0xff] %v160
    %206 = vst [vmem:[#allocation2 + $0x78] sm:$0xff] %v189
    %v207 = vld [vmem:[#allocation3] sm:$0xff]
    %v208 = vld [vmem:[#allocation3 + $0x8] sm:$0xff]
    %v209 = vld [vmem:[#allocation3 + $0x10] sm:$0xff]
    %v210 = vld [vmem:[#allocation3 + $0x18] sm:$0xff]
    %v211 = vld [vmem:[#allocation3 + $0x20] sm:$0xff]
    %v212 = vld [vmem:[#allocation3 + $0x28] sm:$0xff]
    %v213 = vld [vmem:[#allocation3 + $0x30] sm:$0xff]
    %v214 = vld [vmem:[#allocation3 + $0x38] sm:$0xff]
    %s215 = smul.u32 0, 2
    %s216 = smul.addr %s215, 8
    %s217 = scalar_lea.vmem [#allocation2], %s216
    %v218 = vld [vmem:[%s217] sm:$0xff]
    %v219 = vld [vmem:[%s217 + $0x8] sm:$0xff]
    %v228 = vunpack.c.l.b16 %v207
    %v229 = vunpack.c.h.b16 %v207
    %v230 = vunpack.c.l.b16 %v208
    %v231 = vunpack.c.h.b16 %v208
    %v232 = vunpack.c.l.b16 %v209
    %v233 = vunpack.c.h.b16 %v209
    %v234 = vunpack.c.l.b16 %v210
    %v235 = vunpack.c.h.b16 %v210
    %v236 = vunpack.c.l.b16 %v211
    %v237 = vunpack.c.h.b16 %v211
    %v238 = vunpack.c.l.b16 %v212
    %v239 = vunpack.c.h.b16 %v212
    %v240 = vunpack.c.l.b16 %v213
    %v241 = vunpack.c.h.b16 %v213
    %v242 = vunpack.c.l.b16 %v214
    %v243 = vunpack.c.h.b16 %v214
    %v244 = vpack.c.b16 %v230, %v228
    %v245 = vpack.c.b16 %v231, %v229
    %v246 = vpack.c.b16 %v234, %v232
    %v247 = vpack.c.b16 %v235, %v233
    %v248 = vpack.c.b16 %v238, %v236
    %v249 = vpack.c.b16 %v239, %v237
    %v250 = vpack.c.b16 %v242, %v240
    %v251 = vpack.c.b16 %v243, %v241
    %vm260 = vcmask 523264
    %v262 = vsel %vm260, 0, 0
    %264 = vmatpush.bf16.msra.mxu0 0
    %265 = vmatpush.bf16.msra.mxu0 0
    %266 = vmatpush.bf16.msra.mxu0 0
    %267 = vmatpush.bf16.msra.mxu0 0
    %268 = vmatpush.bf16.msra.mxu0 %v250
    %269 = vmatpush.bf16.msra.mxu0 %v248
    %270 = vmatpush.bf16.msra.mxu0 %v246
    %271 = vmatpush.bf16.msra.mxu0 %v244
    %272 = vmatmul.bf16.gmra.mxu0 %v262
    %v273 = vpop.f32.mrf.mxu0
    %v274 = vadd.f32 0.0, %v273
    %v275 = vpop.f32.mrf.mxu0
    %276 = vdwg.mxu0
    %277 = vmatpush.bf16.msra.mxu0 0
    %278 = vmatpush.bf16.msra.mxu0 0
    %279 = vmatpush.bf16.msra.mxu0 0
    %280 = vmatpush.bf16.msra.mxu0 0
    %281 = vmatpush.bf16.msra.mxu0 %v251
    %282 = vmatpush.bf16.msra.mxu0 %v249
    %283 = vmatpush.bf16.msra.mxu0 %v247
    %284 = vmatpush.bf16.msra.mxu0 %v245
    %285 = vmatmul.bf16.gmra.mxu0 %v262
    %v286 = vpop.f32.mrf.mxu0
    %v287 = vadd.f32 0.0, %v286
    %v288 = vpop.f32.mrf.mxu0
    %289 = vdwg.mxu0
    %v290 = vadd.f32 %v218, %v274
    %v291 = vadd.f32 %v219, %v287
    %v292 = vxor.u32 %v290, 2147483648
    %v293 = vmul.f32 %v292, 1.442695
    %v294 = vpow.pop %v293
    %v295 = vadd.f32 %v294, 1.0
    %v296 = vrcp.pop %v295
    %v297 = vmul.f32 %v295, %v296
    %v298 = vsub.f32 1.0, %v297
    %v299 = vmul.f32 %v296, %v298
    %v300 = vadd.f32 %v296, %v299
    %vm301 = vweird.f32 %v295
    %vm302 = vweird.f32 %v296
    %vm303 = vmor %vm301, %vm302
    %v304 = vsel %vm303, %v296, %v300
    %v305 = vand.u32 2147483647, %v295
    %vm306 = vcmp.eq.f32.partialorder %v305, 8.507059e+37
    %v307 = vand.u32 %v295, 2147483648
    %v308 = vor.u32 1.1754944e-38, %v307
    %v309 = vsel %vm306, %v308, %v304
    %v310 = vmul.f32 1.0, %v309
    %v311 = vtanh.pop %v291
    %v312 = vxor.u32 %v291, 2147483648
    %v313 = vmul.f32 %v312, 1.442695
    %v314 = vpow.pop %v313
    %v315 = vadd.f32 %v314, 1.0
    %v316 = vrcp.pop %v315
    %v317 = vmul.f32 %v315, %v316
    %v318 = vsub.f32 1.0, %v317
    %v319 = vmul.f32 %v316, %v318
    %v320 = vadd.f32 %v316, %v319
    %vm321 = vweird.f32 %v315
    %vm322 = vweird.f32 %v316
    %vm323 = vmor %vm321, %vm322
    %v324 = vsel %vm323, %v316, %v320
    %v325 = vand.u32 2147483647, %v315
    %vm326 = vcmp.eq.f32.partialorder %v325, 8.507059e+37
    %v327 = vand.u32 %v315, 2147483648
    %v328 = vor.u32 1.1754944e-38, %v327
    %v329 = vsel %vm326, %v328, %v324
    %v330 = vmul.f32 1.0, %v329
    %v331 = vmul.f32 %v310, 0.0
    %v332 = vmul.f32 %v310, %v311
    %334 = vrot.lane.b32.xlu0 %v332, 64
    %v335 = vpop.permute.xlu0 %334
    %v337 = vadd.f32 %v331, %v335
    %v338 = vtanh.pop %v337
    %v339 = vmul.f32 %v330, %v338
    %s340 = smul.u32 1, 2
    %s341 = smul.addr %s340, 8
    %s342 = scalar_lea.vmem [#allocation2], %s341
    %v343 = vld [vmem:[%s342] sm:$0xff]
    %v344 = vld [vmem:[%s342 + $0x8] sm:$0xff]
    %v345 = vpack.c.bf16 %v339, %v339
    %347 = vrot.lane.b32.xlu0 %v345, 64
    %v348 = vpop.permute.xlu0 %347
    %v350 = vsel %vm260, %v348, 0
    %352 = vmatpush.bf16.msra.mxu0 0
    %353 = vmatpush.bf16.msra.mxu0 0
    %354 = vmatpush.bf16.msra.mxu0 0
    %355 = vmatpush.bf16.msra.mxu0 0
    %356 = vmatpush.bf16.msra.mxu0 %v250
    %357 = vmatpush.bf16.msra.mxu0 %v248
    %358 = vmatpush.bf16.msra.mxu0 %v246
    %359 = vmatpush.bf16.msra.mxu0 %v244
    %360 = vmatmul.bf16.gmra.mxu0 %v350
    %v361 = vpop.f32.mrf.mxu0
    %v362 = vadd.f32 0.0, %v361
    %v363 = vpop.f32.mrf.mxu0
    %364 = vdwg.mxu0
    %365 = vmatpush.bf16.msra.mxu0 0
    %366 = vmatpush.bf16.msra.mxu0 0
    %367 = vmatpush.bf16.msra.mxu0 0
    %368 = vmatpush.bf16.msra.mxu0 0
    %369 = vmatpush.bf16.msra.mxu0 %v251
    %370 = vmatpush.bf16.msra.mxu0 %v249
    %371 = vmatpush.bf16.msra.mxu0 %v247
    %372 = vmatpush.bf16.msra.mxu0 %v245
    %373 = vmatmul.bf16.gmra.mxu0 %v350
    %v374 = vpop.f32.mrf.mxu0
    %v375 = vadd.f32 0.0, %v374
    %v376 = vpop.f32.mrf.mxu0
    %377 = vdwg.mxu0
    %v378 = vadd.f32 %v343, %v362
    %v379 = vadd.f32 %v344, %v375
    %v380 = vxor.u32 %v378, 2147483648
    %v381 = vmul.f32 %v380, 1.442695
    %v382 = vpow.pop %v381
    %v383 = vadd.f32 %v382, 1.0
    %v384 = vrcp.pop %v383
    %v385 = vmul.f32 %v383, %v384
    %v386 = vsub.f32 1.0, %v385
    %v387 = vmul.f32 %v384, %v386
    %v388 = vadd.f32 %v384, %v387
    %vm389 = vweird.f32 %v383
    %vm390 = vweird.f32 %v384
    %vm391 = vmor %vm389, %vm390
    %v392 = vsel %vm391, %v384, %v388
    %v393 = vand.u32 2147483647, %v383
    %vm394 = vcmp.eq.f32.partialorder %v393, 8.507059e+37
    %v395 = vand.u32 %v383, 2147483648
    %v396 = vor.u32 1.1754944e-38, %v395
    %v397 = vsel %vm394, %v396, %v392
    %v398 = vmul.f32 1.0, %v397
    %v399 = vtanh.pop %v379
    %v400 = vxor.u32 %v379, 2147483648
    %v401 = vmul.f32 %v400, 1.442695
    %v402 = vpow.pop %v401
    %v403 = vadd.f32 %v402, 1.0
    %v404 = vrcp.pop %v403
    %v405 = vmul.f32 %v403, %v404
    %v406 = vsub.f32 1.0, %v405
    %v407 = vmul.f32 %v404, %v406
    %v408 = vadd.f32 %v404, %v407
    %vm409 = vweird.f32 %v403
    %vm410 = vweird.f32 %v404
    %vm411 = vmor %vm409, %vm410
    %v412 = vsel %vm411, %v404, %v408
    %v413 = vand.u32 2147483647, %v403
    %vm414 = vcmp.eq.f32.partialorder %v413, 8.507059e+37
    %v415 = vand.u32 %v403, 2147483648
    %v416 = vor.u32 1.1754944e-38, %v415
    %v417 = vsel %vm414, %v416, %v412
    %v418 = vmul.f32 1.0, %v417
    %v419 = vmul.f32 %v398, %v337
    %v420 = vmul.f32 %v398, %v399
    %422 = vrot.lane.b32.xlu0 %v420, 64
    %v423 = vpop.permute.xlu0 %422
    %v425 = vadd.f32 %v419, %v423
    %v426 = vtanh.pop %v425
    %v427 = vmul.f32 %v418, %v426
    %s428 = smul.u32 2, 2
    %s429 = smul.addr %s428, 8
    %s430 = scalar_lea.vmem [#allocation2], %s429
    %v431 = vld [vmem:[%s430] sm:$0xff]
    %v432 = vld [vmem:[%s430 + $0x8] sm:$0xff]
    %v433 = vpack.c.bf16 %v427, %v427
    %435 = vrot.lane.b32.xlu0 %v433, 64
    %v436 = vpop.permute.xlu0 %435
    %v438 = vsel %vm260, %v436, 0
    %440 = vmatpush.bf16.msra.mxu0 0
    %441 = vmatpush.bf16.msra.mxu0 0
    %442 = vmatpush.bf16.msra.mxu0 0
    %443 = vmatpush.bf16.msra.mxu0 0
    %444 = vmatpush.bf16.msra.mxu0 %v250
    %445 = vmatpush.bf16.msra.mxu0 %v248
    %446 = vmatpush.bf16.msra.mxu0 %v246
    %447 = vmatpush.bf16.msra.mxu0 %v244
    %448 = vmatmul.bf16.gmra.mxu0 %v438
    %v449 = vpop.f32.mrf.mxu0
    %v450 = vadd.f32 0.0, %v449
    %v451 = vpop.f32.mrf.mxu0
    %452 = vdwg.mxu0
    %453 = vmatpush.bf16.msra.mxu0 0
    %454 = vmatpush.bf16.msra.mxu0 0
    %455 = vmatpush.bf16.msra.mxu0 0
    %456 = vmatpush.bf16.msra.mxu0 0
    %457 = vmatpush.bf16.msra.mxu0 %v251
    %458 = vmatpush.bf16.msra.mxu0 %v249
    %459 = vmatpush.bf16.msra.mxu0 %v247
    %460 = vmatpush.bf16.msra.mxu0 %v245
    %461 = vmatmul.bf16.gmra.mxu0 %v438
    %v462 = vpop.f32.mrf.mxu0
    %v463 = vadd.f32 0.0, %v462
    %v464 = vpop.f32.mrf.mxu0
    %465 = vdwg.mxu0
    %v466 = vadd.f32 %v431, %v450
    %v467 = vadd.f32 %v432, %v463
    %v468 = vxor.u32 %v466, 2147483648
    %v469 = vmul.f32 %v468, 1.442695
    %v470 = vpow.pop %v469
    %v471 = vadd.f32 %v470, 1.0
    %v472 = vrcp.pop %v471
    %v473 = vmul.f32 %v471, %v472
    %v474 = vsub.f32 1.0, %v473
    %v475 = vmul.f32 %v472, %v474
    %v476 = vadd.f32 %v472, %v475
    %vm477 = vweird.f32 %v471
    %vm478 = vweird.f32 %v472
    %vm479 = vmor %vm477, %vm478
    %v480 = vsel %vm479, %v472, %v476
    %v481 = vand.u32 2147483647, %v471
    %vm482 = vcmp.eq.f32.partialorder %v481, 8.507059e+37
    %v483 = vand.u32 %v471, 2147483648
    %v484 = vor.u32 1.1754944e-38, %v483
    %v485 = vsel %vm482, %v484, %v480
    %v486 = vmul.f32 1.0, %v485
    %v487 = vtanh.pop %v467
    %v488 = vxor.u32 %v467, 2147483648
    %v489 = vmul.f32 %v488, 1.442695
    %v490 = vpow.pop %v489
    %v491 = vadd.f32 %v490, 1.0
    %v492 = vrcp.pop %v491
    %v493 = vmul.f32 %v491, %v492
    %v494 = vsub.f32 1.0, %v493
    %v495 = vmul.f32 %v492, %v494
    %v496 = vadd.f32 %v492, %v495
    %vm497 = vweird.f32 %v491
    %vm498 = vweird.f32 %v492
    %vm499 = vmor %vm497, %vm498
    %v500 = vsel %vm499, %v492, %v496
    %v501 = vand.u32 2147483647, %v491
    %vm502 = vcmp.eq.f32.partialorder %v501, 8.507059e+37
    %v503 = vand.u32 %v491, 2147483648
    %v504 = vor.u32 1.1754944e-38, %v503
    %v505 = vsel %vm502, %v504, %v500
    %v506 = vmul.f32 1.0, %v505
    %v507 = vmul.f32 %v486, %v425
    %v508 = vmul.f32 %v486, %v487
    %510 = vrot.lane.b32.xlu0 %v508, 64
    %v511 = vpop.permute.xlu0 %510
    %v513 = vadd.f32 %v507, %v511
    %v514 = vtanh.pop %v513
    %v515 = vmul.f32 %v506, %v514
    %s516 = smul.u32 3, 2
    %s517 = smul.addr %s516, 8
    %s518 = scalar_lea.vmem [#allocation2], %s517
    %v519 = vld [vmem:[%s518] sm:$0xff]
    %v520 = vld [vmem:[%s518 + $0x8] sm:$0xff]
    %v521 = vpack.c.bf16 %v515, %v515
    %523 = vrot.lane.b32.xlu0 %v521, 64
    %v524 = vpop.permute.xlu0 %523
    %v526 = vsel %vm260, %v524, 0
    %528 = vmatpush.bf16.msra.mxu0 0
    %529 = vmatpush.bf16.msra.mxu0 0
    %530 = vmatpush.bf16.msra.mxu0 0
    %531 = vmatpush.bf16.msra.mxu0 0
    %532 = vmatpush.bf16.msra.mxu0 %v250
    %533 = vmatpush.bf16.msra.mxu0 %v248
    %534 = vmatpush.bf16.msra.mxu0 %v246
    %535 = vmatpush.bf16.msra.mxu0 %v244
    %536 = vmatmul.bf16.gmra.mxu0 %v526
    %v537 = vpop.f32.mrf.mxu0
    %v538 = vadd.f32 0.0, %v537
    %v539 = vpop.f32.mrf.mxu0
    %540 = vdwg.mxu0
    %541 = vmatpush.bf16.msra.mxu0 0
    %542 = vmatpush.bf16.msra.mxu0 0
    %543 = vmatpush.bf16.msra.mxu0 0
    %544 = vmatpush.bf16.msra.mxu0 0
    %545 = vmatpush.bf16.msra.mxu0 %v251
    %546 = vmatpush.bf16.msra.mxu0 %v249
    %547 = vmatpush.bf16.msra.mxu0 %v247
    %548 = vmatpush.bf16.msra.mxu0 %v245
    %549 = vmatmul.bf16.gmra.mxu0 %v526
    %v550 = vpop.f32.mrf.mxu0
    %v551 = vadd.f32 0.0, %v550
    %v552 = vpop.f32.mrf.mxu0
    %553 = vdwg.mxu0
    %v554 = vadd.f32 %v519, %v538
    %v555 = vadd.f32 %v520, %v551
    %v556 = vxor.u32 %v554, 2147483648
    %v557 = vmul.f32 %v556, 1.442695
    %v558 = vpow.pop %v557
    %v559 = vadd.f32 %v558, 1.0
    %v560 = vrcp.pop %v559
    %v561 = vmul.f32 %v559, %v560
    %v562 = vsub.f32 1.0, %v561
    %v563 = vmul.f32 %v560, %v562
    %v564 = vadd.f32 %v560, %v563
    %vm565 = vweird.f32 %v559
    %vm566 = vweird.f32 %v560
    %vm567 = vmor %vm565, %vm566
    %v568 = vsel %vm567, %v560, %v564
    %v569 = vand.u32 2147483647, %v559
    %vm570 = vcmp.eq.f32.partialorder %v569, 8.507059e+37
    %v571 = vand.u32 %v559, 2147483648
    %v572 = vor.u32 1.1754944e-38, %v571
    %v573 = vsel %vm570, %v572, %v568
    %v574 = vmul.f32 1.0, %v573
    %v575 = vtanh.pop %v555
    %v576 = vxor.u32 %v555, 2147483648
    %v577 = vmul.f32 %v576, 1.442695
    %v578 = vpow.pop %v577
    %v579 = vadd.f32 %v578, 1.0
    %v580 = vrcp.pop %v579
    %v581 = vmul.f32 %v579, %v580
    %v582 = vsub.f32 1.0, %v581
    %v583 = vmul.f32 %v580, %v582
    %v584 = vadd.f32 %v580, %v583
    %vm585 = vweird.f32 %v579
    %vm586 = vweird.f32 %v580
    %vm587 = vmor %vm585, %vm586
    %v588 = vsel %vm587, %v580, %v584
    %v589 = vand.u32 2147483647, %v579
    %vm590 = vcmp.eq.f32.partialorder %v589, 8.507059e+37
    %v591 = vand.u32 %v579, 2147483648
    %v592 = vor.u32 1.1754944e-38, %v591
    %v593 = vsel %vm590, %v592, %v588
    %v594 = vmul.f32 1.0, %v593
    %v595 = vmul.f32 %v574, %v513
    %v596 = vmul.f32 %v574, %v575
    %598 = vrot.lane.b32.xlu0 %v596, 64
    %v599 = vpop.permute.xlu0 %598
    %v601 = vadd.f32 %v595, %v599
    %v602 = vtanh.pop %v601
    %v603 = vmul.f32 %v594, %v602
    %s604 = smul.u32 4, 2
    %s605 = smul.addr %s604, 8
    %s606 = scalar_lea.vmem [#allocation2], %s605
    %v607 = vld [vmem:[%s606] sm:$0xff]
    %v608 = vld [vmem:[%s606 + $0x8] sm:$0xff]
    %v609 = vpack.c.bf16 %v603, %v603
    %611 = vrot.lane.b32.xlu0 %v609, 64
    %v612 = vpop.permute.xlu0 %611
    %v614 = vsel %vm260, %v612, 0
    %616 = vmatpush.bf16.msra.mxu0 0
    %617 = vmatpush.bf16.msra.mxu0 0
    %618 = vmatpush.bf16.msra.mxu0 0
    %619 = vmatpush.bf16.msra.mxu0 0
    %620 = vmatpush.bf16.msra.mxu0 %v250
    %621 = vmatpush.bf16.msra.mxu0 %v248
    %622 = vmatpush.bf16.msra.mxu0 %v246
    %623 = vmatpush.bf16.msra.mxu0 %v244
    %624 = vmatmul.bf16.gmra.mxu0 %v614
    %v625 = vpop.f32.mrf.mxu0
    %v626 = vadd.f32 0.0, %v625
    %v627 = vpop.f32.mrf.mxu0
    %628 = vdwg.mxu0
    %629 = vmatpush.bf16.msra.mxu0 0
    %630 = vmatpush.bf16.msra.mxu0 0
    %631 = vmatpush.bf16.msra.mxu0 0
    %632 = vmatpush.bf16.msra.mxu0 0
    %633 = vmatpush.bf16.msra.mxu0 %v251
    %634 = vmatpush.bf16.msra.mxu0 %v249
    %635 = vmatpush.bf16.msra.mxu0 %v247
    %636 = vmatpush.bf16.msra.mxu0 %v245
    %637 = vmatmul.bf16.gmra.mxu0 %v614
    %v638 = vpop.f32.mrf.mxu0
    %v639 = vadd.f32 0.0, %v638
    %v640 = vpop.f32.mrf.mxu0
    %641 = vdwg.mxu0
    %v642 = vadd.f32 %v607, %v626
    %v643 = vadd.f32 %v608, %v639
    %v644 = vxor.u32 %v642, 2147483648
    %v645 = vmul.f32 %v644, 1.442695
    %v646 = vpow.pop %v645
    %v647 = vadd.f32 %v646, 1.0
    %v648 = vrcp.pop %v647
    %v649 = vmul.f32 %v647, %v648
    %v650 = vsub.f32 1.0, %v649
    %v651 = vmul.f32 %v648, %v650
    %v652 = vadd.f32 %v648, %v651
    %vm653 = vweird.f32 %v647
    %vm654 = vweird.f32 %v648
    %vm655 = vmor %vm653, %vm654
    %v656 = vsel %vm655, %v648, %v652
    %v657 = vand.u32 2147483647, %v647
    %vm658 = vcmp.eq.f32.partialorder %v657, 8.507059e+37
    %v659 = vand.u32 %v647, 2147483648
    %v660 = vor.u32 1.1754944e-38, %v659
    %v661 = vsel %vm658, %v660, %v656
    %v662 = vmul.f32 1.0, %v661
    %v663 = vtanh.pop %v643
    %v664 = vxor.u32 %v643, 2147483648
    %v665 = vmul.f32 %v664, 1.442695
    %v666 = vpow.pop %v665
    %v667 = vadd.f32 %v666, 1.0
    %v668 = vrcp.pop %v667
    %v669 = vmul.f32 %v667, %v668
    %v670 = vsub.f32 1.0, %v669
    %v671 = vmul.f32 %v668, %v670
    %v672 = vadd.f32 %v668, %v671
    %vm673 = vweird.f32 %v667
    %vm674 = vweird.f32 %v668
    %vm675 = vmor %vm673, %vm674
    %v676 = vsel %vm675, %v668, %v672
    %v677 = vand.u32 2147483647, %v667
    %vm678 = vcmp.eq.f32.partialorder %v677, 8.507059e+37
    %v679 = vand.u32 %v667, 2147483648
    %v680 = vor.u32 1.1754944e-38, %v679
    %v681 = vsel %vm678, %v680, %v676
    %v682 = vmul.f32 1.0, %v681
    %v683 = vmul.f32 %v662, %v601
    %v684 = vmul.f32 %v662, %v663
    %686 = vrot.lane.b32.xlu0 %v684, 64
    %v687 = vpop.permute.xlu0 %686
    %v689 = vadd.f32 %v683, %v687
    %v690 = vtanh.pop %v689
    %v691 = vmul.f32 %v682, %v690
    %s692 = smul.u32 5, 2
    %s693 = smul.addr %s692, 8
    %s694 = scalar_lea.vmem [#allocation2], %s693
    %v695 = vld [vmem:[%s694] sm:$0xff]
    %v696 = vld [vmem:[%s694 + $0x8] sm:$0xff]
    %v697 = vpack.c.bf16 %v691, %v691
    %699 = vrot.lane.b32.xlu0 %v697, 64
    %v700 = vpop.permute.xlu0 %699
    %v702 = vsel %vm260, %v700, 0
    %704 = vmatpush.bf16.msra.mxu0 0
    %705 = vmatpush.bf16.msra.mxu0 0
    %706 = vmatpush.bf16.msra.mxu0 0
    %707 = vmatpush.bf16.msra.mxu0 0
    %708 = vmatpush.bf16.msra.mxu0 %v250
    %709 = vmatpush.bf16.msra.mxu0 %v248
    %710 = vmatpush.bf16.msra.mxu0 %v246
    %711 = vmatpush.bf16.msra.mxu0 %v244
    %712 = vmatmul.bf16.gmra.mxu0 %v702
    %v713 = vpop.f32.mrf.mxu0
    %v714 = vadd.f32 0.0, %v713
    %v715 = vpop.f32.mrf.mxu0
    %716 = vdwg.mxu0
    %717 = vmatpush.bf16.msra.mxu0 0
    %718 = vmatpush.bf16.msra.mxu0 0
    %719 = vmatpush.bf16.msra.mxu0 0
    %720 = vmatpush.bf16.msra.mxu0 0
    %721 = vmatpush.bf16.msra.mxu0 %v251
    %722 = vmatpush.bf16.msra.mxu0 %v249
    %723 = vmatpush.bf16.msra.mxu0 %v247
    %724 = vmatpush.bf16.msra.mxu0 %v245
    %725 = vmatmul.bf16.gmra.mxu0 %v702
    %v726 = vpop.f32.mrf.mxu0
    %v727 = vadd.f32 0.0, %v726
    %v728 = vpop.f32.mrf.mxu0
    %729 = vdwg.mxu0
    %v730 = vadd.f32 %v695, %v714
    %v731 = vadd.f32 %v696, %v727
    %v732 = vxor.u32 %v730, 2147483648
    %v733 = vmul.f32 %v732, 1.442695
    %v734 = vpow.pop %v733
    %v735 = vadd.f32 %v734, 1.0
    %v736 = vrcp.pop %v735
    %v737 = vmul.f32 %v735, %v736
    %v738 = vsub.f32 1.0, %v737
    %v739 = vmul.f32 %v736, %v738
    %v740 = vadd.f32 %v736, %v739
    %vm741 = vweird.f32 %v735
    %vm742 = vweird.f32 %v736
    %vm743 = vmor %vm741, %vm742
    %v744 = vsel %vm743, %v736, %v740
    %v745 = vand.u32 2147483647, %v735
    %vm746 = vcmp.eq.f32.partialorder %v745, 8.507059e+37
    %v747 = vand.u32 %v735, 2147483648
    %v748 = vor.u32 1.1754944e-38, %v747
    %v749 = vsel %vm746, %v748, %v744
    %v750 = vmul.f32 1.0, %v749
    %v751 = vtanh.pop %v731
    %v752 = vxor.u32 %v731, 2147483648
    %v753 = vmul.f32 %v752, 1.442695
    %v754 = vpow.pop %v753
    %v755 = vadd.f32 %v754, 1.0
    %v756 = vrcp.pop %v755
    %v757 = vmul.f32 %v755, %v756
    %v758 = vsub.f32 1.0, %v757
    %v759 = vmul.f32 %v756, %v758
    %v760 = vadd.f32 %v756, %v759
    %vm761 = vweird.f32 %v755
    %vm762 = vweird.f32 %v756
    %vm763 = vmor %vm761, %vm762
    %v764 = vsel %vm763, %v756, %v760
    %v765 = vand.u32 2147483647, %v755
    %vm766 = vcmp.eq.f32.partialorder %v765, 8.507059e+37
    %v767 = vand.u32 %v755, 2147483648
    %v768 = vor.u32 1.1754944e-38, %v767
    %v769 = vsel %vm766, %v768, %v764
    %v770 = vmul.f32 1.0, %v769
    %v771 = vmul.f32 %v750, %v689
    %v772 = vmul.f32 %v750, %v751
    %774 = vrot.lane.b32.xlu0 %v772, 64
    %v775 = vpop.permute.xlu0 %774
    %v777 = vadd.f32 %v771, %v775
    %v778 = vtanh.pop %v777
    %v779 = vmul.f32 %v770, %v778
    %s780 = smul.u32 6, 2
    %s781 = smul.addr %s780, 8
    %s782 = scalar_lea.vmem [#allocation2], %s781
    %v783 = vld [vmem:[%s782] sm:$0xff]
    %v784 = vld [vmem:[%s782 + $0x8] sm:$0xff]
    %v785 = vpack.c.bf16 %v779, %v779
    %787 = vrot.lane.b32.xlu0 %v785, 64
    %v788 = vpop.permute.xlu0 %787
    %v790 = vsel %vm260, %v788, 0
    %792 = vmatpush.bf16.msra.mxu0 0
    %793 = vmatpush.bf16.msra.mxu0 0
    %794 = vmatpush.bf16.msra.mxu0 0
    %795 = vmatpush.bf16.msra.mxu0 0
    %796 = vmatpush.bf16.msra.mxu0 %v250
    %797 = vmatpush.bf16.msra.mxu0 %v248
    %798 = vmatpush.bf16.msra.mxu0 %v246
    %799 = vmatpush.bf16.msra.mxu0 %v244
    %800 = vmatmul.bf16.gmra.mxu0 %v790
    %v801 = vpop.f32.mrf.mxu0
    %v802 = vadd.f32 0.0, %v801
    %v803 = vpop.f32.mrf.mxu0
    %804 = vdwg.mxu0
    %805 = vmatpush.bf16.msra.mxu0 0
    %806 = vmatpush.bf16.msra.mxu0 0
    %807 = vmatpush.bf16.msra.mxu0 0
    %808 = vmatpush.bf16.msra.mxu0 0
    %809 = vmatpush.bf16.msra.mxu0 %v251
    %810 = vmatpush.bf16.msra.mxu0 %v249
    %811 = vmatpush.bf16.msra.mxu0 %v247
    %812 = vmatpush.bf16.msra.mxu0 %v245
    %813 = vmatmul.bf16.gmra.mxu0 %v790
    %v814 = vpop.f32.mrf.mxu0
    %v815 = vadd.f32 0.0, %v814
    %v816 = vpop.f32.mrf.mxu0
    %817 = vdwg.mxu0
    %v818 = vadd.f32 %v783, %v802
    %v819 = vadd.f32 %v784, %v815
    %v820 = vxor.u32 %v818, 2147483648
    %v821 = vmul.f32 %v820, 1.442695
    %v822 = vpow.pop %v821
    %v823 = vadd.f32 %v822, 1.0
    %v824 = vrcp.pop %v823
    %v825 = vmul.f32 %v823, %v824
    %v826 = vsub.f32 1.0, %v825
    %v827 = vmul.f32 %v824, %v826
    %v828 = vadd.f32 %v824, %v827
    %vm829 = vweird.f32 %v823
    %vm830 = vweird.f32 %v824
    %vm831 = vmor %vm829, %vm830
    %v832 = vsel %vm831, %v824, %v828
    %v833 = vand.u32 2147483647, %v823
    %vm834 = vcmp.eq.f32.partialorder %v833, 8.507059e+37
    %v835 = vand.u32 %v823, 2147483648
    %v836 = vor.u32 1.1754944e-38, %v835
    %v837 = vsel %vm834, %v836, %v832
    %v838 = vmul.f32 1.0, %v837
    %v839 = vtanh.pop %v819
    %v840 = vxor.u32 %v819, 2147483648
    %v841 = vmul.f32 %v840, 1.442695
    %v842 = vpow.pop %v841
    %v843 = vadd.f32 %v842, 1.0
    %v844 = vrcp.pop %v843
    %v845 = vmul.f32 %v843, %v844
    %v846 = vsub.f32 1.0, %v845
    %v847 = vmul.f32 %v844, %v846
    %v848 = vadd.f32 %v844, %v847
    %vm849 = vweird.f32 %v843
    %vm850 = vweird.f32 %v844
    %vm851 = vmor %vm849, %vm850
    %v852 = vsel %vm851, %v844, %v848
    %v853 = vand.u32 2147483647, %v843
    %vm854 = vcmp.eq.f32.partialorder %v853, 8.507059e+37
    %v855 = vand.u32 %v843, 2147483648
    %v856 = vor.u32 1.1754944e-38, %v855
    %v857 = vsel %vm854, %v856, %v852
    %v858 = vmul.f32 1.0, %v857
    %v859 = vmul.f32 %v838, %v777
    %v860 = vmul.f32 %v838, %v839
    %862 = vrot.lane.b32.xlu0 %v860, 64
    %v863 = vpop.permute.xlu0 %862
    %v865 = vadd.f32 %v859, %v863
    %v866 = vtanh.pop %v865
    %v867 = vmul.f32 %v858, %v866
    %s868 = smul.u32 7, 2
    %s869 = smul.addr %s868, 8
    %s870 = scalar_lea.vmem [#allocation2], %s869
    %v871 = vld [vmem:[%s870] sm:$0xff]
    %v872 = vld [vmem:[%s870 + $0x8] sm:$0xff]
    %v873 = vpack.c.bf16 %v867, %v867
    %875 = vrot.lane.b32.xlu0 %v873, 64
    %v876 = vpop.permute.xlu0 %875
    %v878 = vsel %vm260, %v876, 0
    %880 = vmatpush.bf16.msra.mxu0 0
    %881 = vmatpush.bf16.msra.mxu0 0
    %882 = vmatpush.bf16.msra.mxu0 0
    %883 = vmatpush.bf16.msra.mxu0 0
    %884 = vmatpush.bf16.msra.mxu0 %v250
    %885 = vmatpush.bf16.msra.mxu0 %v248
    %886 = vmatpush.bf16.msra.mxu0 %v246
    %887 = vmatpush.bf16.msra.mxu0 %v244
    %888 = vmatmul.bf16.gmra.mxu0 %v878
    %v889 = vpop.f32.mrf.mxu0
    %v890 = vadd.f32 0.0, %v889
    %v891 = vpop.f32.mrf.mxu0
    %892 = vdwg.mxu0
    %893 = vmatpush.bf16.msra.mxu0 0
    %894 = vmatpush.bf16.msra.mxu0 0
    %895 = vmatpush.bf16.msra.mxu0 0
    %896 = vmatpush.bf16.msra.mxu0 0
    %897 = vmatpush.bf16.msra.mxu0 %v251
    %898 = vmatpush.bf16.msra.mxu0 %v249
    %899 = vmatpush.bf16.msra.mxu0 %v247
    %900 = vmatpush.bf16.msra.mxu0 %v245
    %901 = vmatmul.bf16.gmra.mxu0 %v878
    %v902 = vpop.f32.mrf.mxu0
    %v903 = vadd.f32 0.0, %v902
    %v904 = vpop.f32.mrf.mxu0
    %905 = vdwg.mxu0
    %v906 = vadd.f32 %v871, %v890
    %v907 = vadd.f32 %v872, %v903
    %v908 = vxor.u32 %v906, 2147483648
    %v909 = vmul.f32 %v908, 1.442695
    %v910 = vpow.pop %v909
    %v911 = vadd.f32 %v910, 1.0
    %v912 = vrcp.pop %v911
    %v913 = vmul.f32 %v911, %v912
    %v914 = vsub.f32 1.0, %v913
    %v915 = vmul.f32 %v912, %v914
    %v916 = vadd.f32 %v912, %v915
    %vm917 = vweird.f32 %v911
    %vm918 = vweird.f32 %v912
    %vm919 = vmor %vm917, %vm918
    %v920 = vsel %vm919, %v912, %v916
    %v921 = vand.u32 2147483647, %v911
    %vm922 = vcmp.eq.f32.partialorder %v921, 8.507059e+37
    %v923 = vand.u32 %v911, 2147483648
    %v924 = vor.u32 1.1754944e-38, %v923
    %v925 = vsel %vm922, %v924, %v920
    %v926 = vmul.f32 1.0, %v925
    %v927 = vtanh.pop %v907
    %v928 = vxor.u32 %v907, 2147483648
    %v929 = vmul.f32 %v928, 1.442695
    %v930 = vpow.pop %v929
    %v931 = vadd.f32 %v930, 1.0
    %v932 = vrcp.pop %v931
    %v933 = vmul.f32 %v931, %v932
    %v934 = vsub.f32 1.0, %v933
    %v935 = vmul.f32 %v932, %v934
    %v936 = vadd.f32 %v932, %v935
    %vm937 = vweird.f32 %v931
    %vm938 = vweird.f32 %v932
    %vm939 = vmor %vm937, %vm938
    %v940 = vsel %vm939, %v932, %v936
    %v941 = vand.u32 2147483647, %v931
    %vm942 = vcmp.eq.f32.partialorder %v941, 8.507059e+37
    %v943 = vand.u32 %v931, 2147483648
    %v944 = vor.u32 1.1754944e-38, %v943
    %v945 = vsel %vm942, %v944, %v940
    %v946 = vmul.f32 1.0, %v945
    %v947 = vmul.f32 %v926, %v865
    %v948 = vmul.f32 %v926, %v927
    %950 = vrot.lane.b32.xlu0 %v948, 64
    %v951 = vpop.permute.xlu0 %950
    %v953 = vadd.f32 %v947, %v951
    %v954 = vtanh.pop %v953
    %v955 = vmul.f32 %v946, %v954
    %v956 = vld [vmem:[#allocation6] sm:$0xff]
    %v957 = vld [vmem:[#allocation6 + $0x8] sm:$0xff]
    %v958 = vld [vmem:[#allocation6 + $0x10] sm:$0xff]
    %v959 = vld [vmem:[#allocation6 + $0x18] sm:$0xff]
    %v960 = vld [vmem:[#allocation6 + $0x20] sm:$0xff]
    %v961 = vld [vmem:[#allocation6 + $0x28] sm:$0xff]
    %v962 = vld [vmem:[#allocation6 + $0x30] sm:$0xff]
    %v963 = vld [vmem:[#allocation6 + $0x38] sm:$0xff]
    %v964 = vld [vmem:[%s5] sm:$0x1]
    %v966 = vperm.slane %v964, 0
    %969 = vrot.lane.b32.xlu0 %v955, 64
    %v970 = vpop.permute.xlu0 %969
    %v971 = vsel %vm260, %v970, 0
    %973 = vmatpush.msra.mxu0 0.0
    %974 = vmatpush.msra.mxu0 0.0
    %975 = vmatpush.msra.mxu0 0.0
    %976 = vmatpush.msra.mxu0 0.0
    %977 = vmatpush.msra.mxu0 0.0
    %978 = vmatpush.msra.mxu0 0.0
    %979 = vmatpush.msra.mxu0 0.0
    %980 = vmatpush.msra.mxu0 0.0
    %981 = vmatpush.msra.mxu0 %v963
    %982 = vmatpush.msra.mxu0 %v962
    %983 = vmatpush.msra.mxu0 %v961
    %984 = vmatpush.msra.mxu0 %v960
    %985 = vmatpush.msra.mxu0 %v959
    %986 = vmatpush.msra.mxu0 %v958
    %987 = vmatpush.msra.mxu0 %v957
    %988 = vmatpush.msra.mxu0 %v956
    %989 = vmatmul.f32.gmra.mxu0 %v971
    %v990 = vpop.f32.mrf.mxu0
    %v991 = vadd.f32 %v966, %v990
    %992 = vdwg.mxu0
    %993 = vst [vmem:[#allocation8] sm:$0xff] %v991
    // Predicated region
    $region34: #{tpu_custom_call.1} parent=1 // pred_check
      _
    $region35: #{tpu_custom_call.1} parent=1 // pred_check_branch
      %995 = sbr.rel (0) target = $region37
    $region36: #{tpu_custom_call.1} parent=1 // pred_region
      %997 = vsyncadd [#allocation5], 0
      %s999 = sshll.u32 [#allocation8], 4
      %s1000 = int_to_ptr.vmem [resolvable:$true] %s999
      %s1001 = sshll.u32 %s6, 4
      %s1002 = int_to_ptr.hbm [resolvable:$true] %s1001
      %1004 = dma.vmem_to_hbm [thread:$0]  %s1000, 128, %s1002, [#allocation5]
    $region37: #{tpu_custom_call.1} parent=1 // pred_fallthru
      _
    // Predicated region
    $region38: #{tpu_custom_call.1} parent=1 // pred_check
      _
    $region39: #{tpu_custom_call.1} parent=1 // pred_check_branch
      %1006 = sbr.rel (0) target = $region41
    $region40: #{tpu_custom_call.1} parent=1 // pred_region
      %1008 = dma.done [#allocation5], 128
    $region41: #{tpu_custom_call.1} parent=1 // pred_fallthru
      _
    %1009 = vsyncpa [#allocation4], 1
    %1010 = vsyncpa [#allocation7], 1
    %1011 = vsyncpa [#allocation5], 1

</llo_original>
